<compile_context>
chip_gen: v7x
topology: tpu7x:2x2x1
jax: 0.10.0
libtpu: 0.0.40
codegen_flags: <defaults>
</compile_context>

<pallas_src>
import functools

import jax
import jax.numpy as jnp
from jax.experimental import pallas as pl
from jax.experimental.pallas import tpu as pltpu


def _silu(t):
    # exp and the reciprocal both land on the EUP slot; approx=False keeps
    # full precision so the rtol=1e-3 / atol=1e-4 check stays safe.
    return t * pl.reciprocal(1.0 + jnp.exp(-t), approx=False)


def _mv2_kernel(x_ref, w1t_ref, b1_ref, wd9_ref, b2_ref, w3t_ref, b3_ref,
                m_ref, o_ref, *, W, L, use_res):
    """One group of images per grid step; activations kept channel-major (C, L).

    L = images_per_step * H * W rides the 128-lane axis (lane-dense)."""
    x = x_ref[0]                                            # (Cin, L)

    # ---- 1x1 expand conv (BN scale folded into w1t) + bias + SiLU -----------
    h = jnp.dot(w1t_ref[...], x, preferred_element_type=jnp.float32)
    h = _silu(h + b1_ref[...])                              # (hidden, L)

    # ---- 3x3 depthwise conv, stride 1, pad 1: row pass then column pass -----
    # Masks are precomputed per-image in the wrapper (from pos % HW), so
    # folding the batch into the lane axis keeps image boundaries correct and
    # the lane-rolls never leak across images.
    m_ru = m_ref[0]                                         # row >= 1      (1, L)
    m_rd = m_ref[1]                                         # row <  H - 1
    m_cl = m_ref[2]                                         # col >= 1
    m_cr = m_ref[3]                                         # col <  W - 1

    r_m1 = m_ru * pltpu.roll(h, shift=W, axis=1)            # h[p - W]  (row - 1)
    r_p1 = m_rd * pltpu.roll(h, shift=L - W, axis=1)        # h[p + W]  (row + 1)

    w = wd9_ref                                             # (9, hidden, 1), tap k=(di+1)*3+(dj+1)
    t_m1 = w[0] * r_m1 + w[3] * h + w[6] * r_p1             # column tap dj = -1
    t_0 = w[1] * r_m1 + w[4] * h + w[7] * r_p1              # column tap dj =  0
    t_p1 = w[2] * r_m1 + w[5] * h + w[8] * r_p1             # column tap dj = +1

    acc = (t_0
           + m_cl * pltpu.roll(t_m1, shift=1, axis=1)       # t_m1[p - 1]
           + m_cr * pltpu.roll(t_p1, shift=L - 1, axis=1))  # t_p1[p + 1]
    acc = _silu(acc + b2_ref[...])

    # ---- 1x1 project conv (BN scale folded into w3t) + bias -----------------
    y = jnp.dot(w3t_ref[...], acc, preferred_element_type=jnp.float32)
    y = y + b3_ref[...]
    if use_res:
        y = y + x
    o_ref[0] = y.astype(o_ref.dtype)


def _default_images_per_step(batch):
    """v7x has 2 TensorCores/chip: keep a parallel batch grid axis so both
    cores stay busy.  v5e/v6e are single-TC: fold the whole batch into the
    lane axis and run a single grid step."""
    kind = ""
    try:
        kind = jax.devices()[0].device_kind.lower()
    except Exception:
        pass
    if "v7" in kind and batch > 1:
        return 1
    return batch


def mv2_block(x_nchw, params, *, use_res, images_per_step=None):
    """MV2Block forward: NCHW in -> NCHW out (kernel is channel-major)."""
    N, Cin, H, W = x_nchw.shape
    w1, s1, b1, wd, s2, b2, w3, s3, b3 = params
    hidden = wd.shape[-1]
    oup = w3.shape[1]
    HW = H * W

    G = images_per_step if images_per_step is not None else _default_images_per_step(N)
    assert N % G == 0, (N, G)
    steps = N // G
    L = G * HW

    # Fold BN scales into conv weights (trace-time transform); only biases
    # enter the kernel.  Depthwise weights land as (9, hidden, 1) so the tap
    # combine uses leading-axis indexing (no lane-offset extracts).
    w1t = jnp.transpose(w1 * s1)                            # (hidden, Cin)
    wd9 = (wd * s2).reshape(9, hidden)[:, :, None]          # (9, hidden, 1)
    w3t = jnp.transpose(w3 * s3)                            # (oup, hidden)
    b1c = jnp.reshape(b1, (hidden, 1))
    b2c = jnp.reshape(b2, (hidden, 1))
    b3c = jnp.reshape(b3, (oup, 1))

    # Precomputed per-image boundary masks (constant block index -> stays
    # resident in VMEM, never re-DMAed).
    pos = jnp.arange(L, dtype=jnp.int32) % HW
    row = pos // W
    col = pos % W
    masks = jnp.stack([row >= 1, row < H - 1, col >= 1, col < W - 1])
    masks = masks.astype(jnp.float32).reshape(4, 1, L)

    # Channel-major, G images folded into the lane axis: (steps, Cin, G*HW).
    x_g = (x_nchw.reshape(steps, G, Cin, HW)
           .transpose(0, 2, 1, 3)
           .reshape(steps, Cin, L))

    def full_spec(arr):
        nd = arr.ndim
        return pl.BlockSpec(arr.shape, lambda n, _nd=nd: (0,) * _nd)

    kernel = functools.partial(_mv2_kernel, W=W, L=L, use_res=use_res)

    io_alias = {0: 0} if (Cin == oup and x_g.dtype == jnp.float32) else {}

    out = pl.pallas_call(
        kernel,
        out_shape=jax.ShapeDtypeStruct((steps, oup, L), jnp.float32),
        grid=(steps,),
        in_specs=[
            pl.BlockSpec((1, Cin, L), lambda n: (n, 0, 0)),
            full_spec(w1t), full_spec(b1c),
            full_spec(wd9), full_spec(b2c),
            full_spec(w3t), full_spec(b3c),
            full_spec(masks),
        ],
        out_specs=pl.BlockSpec((1, oup, L), lambda n: (n, 0, 0)),
        input_output_aliases=io_alias,
        compiler_params=pltpu.CompilerParams(
            dimension_semantics=("parallel",)),
    )(x_g, w1t, b1c, wd9, b2c, w3t, b3c, masks)

    return (out.reshape(steps, oup, G, HW)
            .transpose(0, 2, 1, 3)
            .reshape(N, oup, H, W))


def make_params(key, inp, oup, expansion=4):
    """Deterministic synthetic parameters; BN expressed as scale/bias."""
    hidden = inp * expansion
    ks = jax.random.split(key, 15)

    def folded_bn(k0, k1, k2, k3, c):
        gamma = 1.0 + 0.1 * jax.random.normal(k0, (c,), jnp.float32)
        beta = 0.1 * jax.random.normal(k1, (c,), jnp.float32)
        mean = 0.1 * jax.random.normal(k2, (c,), jnp.float32)
        var = 1.0 + 0.1 * jnp.abs(jax.random.normal(k3, (c,), jnp.float32))
        scale = gamma / jnp.sqrt(var + 1e-5)
        bias = beta - mean * scale
        return scale[None, :], bias[None, :]                # (1, c)

    w1 = 0.1 * jax.random.normal(ks[0], (inp, hidden), jnp.float32)
    wd = 0.1 * jax.random.normal(ks[1], (3, 3, hidden), jnp.float32)
    w3 = 0.1 * jax.random.normal(ks[2], (hidden, oup), jnp.float32)
    s1, b1 = folded_bn(ks[3], ks[4], ks[5], ks[6], hidden)
    s2, b2 = folded_bn(ks[7], ks[8], ks[9], ks[10], hidden)
    s3, b3 = folded_bn(ks[11], ks[12], ks[13], ks[14], oup)
    return (w1, s1, b1, wd, s2, b2, w3, s3, b3)


def reference(x_nchw, params, *, use_res):
    """Plain-JAX reference matching the PyTorch forward (eval-mode BN)."""
    w1, s1, b1, wd, s2, b2, w3, s3, b3 = params
    hidden = wd.shape[-1]
    x = jnp.transpose(x_nchw, (0, 2, 3, 1))                 # NHWC
    h = jnp.einsum('nhwc,cd->nhwd', x, w1) * s1 + b1
    h = h * jax.nn.sigmoid(h)
    dw = jnp.transpose(wd, (2, 0, 1))[:, None]              # (hidden,1,3,3)
    hn = jnp.transpose(h, (0, 3, 1, 2))                     # NCHW
    d = jax.lax.conv_general_dilated(
        hn, dw, window_strides=(1, 1), padding=((1, 1), (1, 1)),
        feature_group_count=hidden,
        dimension_numbers=('NCHW', 'OIHW', 'NCHW'))
    d = jnp.transpose(d, (0, 2, 3, 1))
    d = d * s2 + b2
    d = d * jax.nn.sigmoid(d)
    y = jnp.einsum('nhwc,cd->nhwd', d, w3) * s3 + b3
    if use_res:
        y = y + x
    return jnp.transpose(y, (0, 3, 1, 2))


if __name__ == "__main__":
    key = jax.random.PRNGKey(0)
    k_x, k_p = jax.random.split(key)

    N, inp, H, W = 2, 4, 16, 16
    oup, stride, expansion = 4, 1, 4
    use_res = (stride == 1 and inp == oup)

    x = jax.random.normal(k_x, (N, inp, H, W), jnp.float32)
    params = make_params(k_p, inp, oup, expansion)

    fwd = jax.jit(functools.partial(mv2_block, use_res=use_res))
    out = fwd(x, params)
    out = jax.block_until_ready(out)

    ref = reference(x, params, use_res=use_res)
    assert out.shape == (N, oup, H, W), out.shape
    assert jnp.allclose(out, ref, rtol=1e-3, atol=1e-4), (
        float(jnp.max(jnp.abs(out - ref))))

    print("KERNEL_OK")
</pallas_src>

<mosaic_0001>
module attributes {stable_mosaic.version = 11 : i64} {
  func.func @_mv2_kernel(%arg0: i32, %arg1: memref<1x4x512xf32, #tpu.memory_space<vmem>>, %arg2: memref<16x4xf32, #tpu.memory_space<vmem>>, %arg3: memref<16x1xf32, #tpu.memory_space<vmem>>, %arg4: memref<9x16x1xf32, #tpu.memory_space<vmem>>, %arg5: memref<16x1xf32, #tpu.memory_space<vmem>>, %arg6: memref<4x16xf32, #tpu.memory_space<vmem>>, %arg7: memref<4x1xf32, #tpu.memory_space<vmem>>, %arg8: memref<4x1x512xf32, #tpu.memory_space<vmem>>, %arg9: memref<1x4x512xf32, #tpu.memory_space<vmem>>) attributes {dimension_semantics = [#tpu.dimension_semantics<parallel>], iteration_bounds = array<i64: 1>, scalar_prefetch = 0 : i64, scratch_operands = 0 : i64, tpu.core_type = #tpu.core_type<tc>, window_params = [{transform_indices = @transform_0, window_bounds = array<i64: 1, 4, 512>}, {pipeline_mode = #tpu.pipeline_mode<synchronous>, transform_indices = @transform_1, window_bounds = array<i64: 16, 4>}, {pipeline_mode = #tpu.pipeline_mode<synchronous>, transform_indices = @transform_2, window_bounds = array<i64: 16, 1>}, {pipeline_mode = #tpu.pipeline_mode<synchronous>, transform_indices = @transform_3, window_bounds = array<i64: 9, 16, 1>}, {pipeline_mode = #tpu.pipeline_mode<synchronous>, transform_indices = @transform_4, window_bounds = array<i64: 16, 1>}, {pipeline_mode = #tpu.pipeline_mode<synchronous>, transform_indices = @transform_5, window_bounds = array<i64: 4, 16>}, {pipeline_mode = #tpu.pipeline_mode<synchronous>, transform_indices = @transform_6, window_bounds = array<i64: 4, 1>}, {pipeline_mode = #tpu.pipeline_mode<synchronous>, transform_indices = @transform_7, window_bounds = array<i64: 4, 1, 512>}, {transform_indices = @transform_8, window_bounds = array<i64: 1, 4, 512>}]} {
    %c0 = arith.constant 0 : index
    %c0_0 = arith.constant 0 : index
    %c0_1 = arith.constant 0 : index
    %0 = vector.load %arg1[%c0, %c0_0, %c0_1] : memref<1x4x512xf32, #tpu.memory_space<vmem>>, vector<1x4x512xf32>
    %1 = vector.shape_cast %0 : vector<1x4x512xf32> to vector<4x512xf32>
    %c0_2 = arith.constant 0 : index
    %c0_3 = arith.constant 0 : index
    %2 = vector.load %arg2[%c0_2, %c0_3] : memref<16x4xf32, #tpu.memory_space<vmem>>, vector<16x4xf32>
    %cst = arith.constant dense<0.000000e+00> : vector<16x512xf32>
    %3 = tpu.matmul %2, %1, %cst {dimension_numbers = #tpu.dot_dimension_numbers<[1], [0], [0], [1], [0, 0, 1, 1], [], []>} : vector<16x4xf32>, vector<4x512xf32>, vector<16x512xf32> -> vector<16x512xf32>
    %c0_4 = arith.constant 0 : index
    %c0_5 = arith.constant 0 : index
    %4 = vector.load %arg3[%c0_4, %c0_5] : memref<16x1xf32, #tpu.memory_space<vmem>>, vector<16x1xf32>
    %5 = vector.broadcast %4 : vector<16x1xf32> to vector<16x512xf32>
    %6 = arith.addf %3, %5 : vector<16x512xf32>
    %cst_6 = arith.constant 0.000000e+00 : f32
    %7 = vector.broadcast %cst_6 : f32 to vector<16x512xf32>
    %8 = arith.subf %7, %6 : vector<16x512xf32>
    %9 = math.exp %8 : vector<16x512xf32>
    %cst_7 = arith.constant 1.000000e+00 : f32
    %10 = vector.broadcast %cst_7 : f32 to vector<16x512xf32>
    %11 = arith.addf %10, %9 : vector<16x512xf32>
    %12 = tpu.reciprocal %11 : vector<16x512xf32> -> vector<16x512xf32>
    %13 = arith.mulf %6, %12 : vector<16x512xf32>
    %c0_8 = arith.constant 0 : index
    %c0_9 = arith.constant 0 : index
    %c0_10 = arith.constant 0 : index
    %14 = vector.load %arg8[%c0_8, %c0_9, %c0_10] : memref<4x1x512xf32, #tpu.memory_space<vmem>>, vector<1x1x512xf32>
    %15 = vector.shape_cast %14 : vector<1x1x512xf32> to vector<1x512xf32>
    %c1 = arith.constant 1 : index
    %c0_11 = arith.constant 0 : index
    %c0_12 = arith.constant 0 : index
    %16 = vector.load %arg8[%c1, %c0_11, %c0_12] : memref<4x1x512xf32, #tpu.memory_space<vmem>>, vector<1x1x512xf32>
    %17 = vector.shape_cast %16 : vector<1x1x512xf32> to vector<1x512xf32>
    %c2 = arith.constant 2 : index
    %c0_13 = arith.constant 0 : index
    %c0_14 = arith.constant 0 : index
    %18 = vector.load %arg8[%c2, %c0_13, %c0_14] : memref<4x1x512xf32, #tpu.memory_space<vmem>>, vector<1x1x512xf32>
    %19 = vector.shape_cast %18 : vector<1x1x512xf32> to vector<1x512xf32>
    %c3 = arith.constant 3 : index
    %c0_15 = arith.constant 0 : index
    %c0_16 = arith.constant 0 : index
    %20 = vector.load %arg8[%c3, %c0_15, %c0_16] : memref<4x1x512xf32, #tpu.memory_space<vmem>>, vector<1x1x512xf32>
    %21 = vector.shape_cast %20 : vector<1x1x512xf32> to vector<1x512xf32>
    %c16_i32 = arith.constant 16 : i32
    %22 = tpu.dynamic_rotate %13 by %c16_i32 dim 1 : vector<16x512xf32>, i32 -> vector<16x512xf32>
    %23 = vector.broadcast %15 : vector<1x512xf32> to vector<16x512xf32>
    %24 = arith.mulf %23, %22 : vector<16x512xf32>
    %c496_i32 = arith.constant 496 : i32
    %25 = tpu.dynamic_rotate %13 by %c496_i32 dim 1 : vector<16x512xf32>, i32 -> vector<16x512xf32>
    %26 = vector.broadcast %17 : vector<1x512xf32> to vector<16x512xf32>
    %27 = arith.mulf %26, %25 : vector<16x512xf32>
    %c0_17 = arith.constant 0 : index
    %c0_18 = arith.constant 0 : index
    %c0_19 = arith.constant 0 : index
    %28 = vector.load %arg4[%c0_17, %c0_18, %c0_19] : memref<9x16x1xf32, #tpu.memory_space<vmem>>, vector<1x16x1xf32>
    %29 = vector.shape_cast %28 : vector<1x16x1xf32> to vector<16x1xf32>
    %30 = vector.broadcast %29 : vector<16x1xf32> to vector<16x512xf32>
    %31 = arith.mulf %30, %24 : vector<16x512xf32>
    %c3_20 = arith.constant 3 : index
    %c0_21 = arith.constant 0 : index
    %c0_22 = arith.constant 0 : index
    %32 = vector.load %arg4[%c3_20, %c0_21, %c0_22] : memref<9x16x1xf32, #tpu.memory_space<vmem>>, vector<1x16x1xf32>
    %33 = vector.shape_cast %32 : vector<1x16x1xf32> to vector<16x1xf32>
    %34 = vector.broadcast %33 : vector<16x1xf32> to vector<16x512xf32>
    %35 = arith.mulf %34, %13 : vector<16x512xf32>
    %36 = arith.addf %31, %35 : vector<16x512xf32>
    %c6 = arith.constant 6 : index
    %c0_23 = arith.constant 0 : index
    %c0_24 = arith.constant 0 : index
    %37 = vector.load %arg4[%c6, %c0_23, %c0_24] : memref<9x16x1xf32, #tpu.memory_space<vmem>>, vector<1x16x1xf32>
    %38 = vector.shape_cast %37 : vector<1x16x1xf32> to vector<16x1xf32>
    %39 = vector.broadcast %38 : vector<16x1xf32> to vector<16x512xf32>
    %40 = arith.mulf %39, %27 : vector<16x512xf32>
    %41 = arith.addf %36, %40 : vector<16x512xf32>
    %c1_25 = arith.constant 1 : index
    %c0_26 = arith.constant 0 : index
    %c0_27 = arith.constant 0 : index
    %42 = vector.load %arg4[%c1_25, %c0_26, %c0_27] : memref<9x16x1xf32, #tpu.memory_space<vmem>>, vector<1x16x1xf32>
    %43 = vector.shape_cast %42 : vector<1x16x1xf32> to vector<16x1xf32>
    %44 = vector.broadcast %43 : vector<16x1xf32> to vector<16x512xf32>
    %45 = arith.mulf %44, %24 : vector<16x512xf32>
    %c4 = arith.constant 4 : index
    %c0_28 = arith.constant 0 : index
    %c0_29 = arith.constant 0 : index
    %46 = vector.load %arg4[%c4, %c0_28, %c0_29] : memref<9x16x1xf32, #tpu.memory_space<vmem>>, vector<1x16x1xf32>
    %47 = vector.shape_cast %46 : vector<1x16x1xf32> to vector<16x1xf32>
    %48 = vector.broadcast %47 : vector<16x1xf32> to vector<16x512xf32>
    %49 = arith.mulf %48, %13 : vector<16x512xf32>
    %50 = arith.addf %45, %49 : vector<16x512xf32>
    %c7 = arith.constant 7 : index
    %c0_30 = arith.constant 0 : index
    %c0_31 = arith.constant 0 : index
    %51 = vector.load %arg4[%c7, %c0_30, %c0_31] : memref<9x16x1xf32, #tpu.memory_space<vmem>>, vector<1x16x1xf32>
    %52 = vector.shape_cast %51 : vector<1x16x1xf32> to vector<16x1xf32>
    %53 = vector.broadcast %52 : vector<16x1xf32> to vector<16x512xf32>
    %54 = arith.mulf %53, %27 : vector<16x512xf32>
    %55 = arith.addf %50, %54 : vector<16x512xf32>
    %c2_32 = arith.constant 2 : index
    %c0_33 = arith.constant 0 : index
    %c0_34 = arith.constant 0 : index
    %56 = vector.load %arg4[%c2_32, %c0_33, %c0_34] : memref<9x16x1xf32, #tpu.memory_space<vmem>>, vector<1x16x1xf32>
    %57 = vector.shape_cast %56 : vector<1x16x1xf32> to vector<16x1xf32>
    %58 = vector.broadcast %57 : vector<16x1xf32> to vector<16x512xf32>
    %59 = arith.mulf %58, %24 : vector<16x512xf32>
    %c5 = arith.constant 5 : index
    %c0_35 = arith.constant 0 : index
    %c0_36 = arith.constant 0 : index
    %60 = vector.load %arg4[%c5, %c0_35, %c0_36] : memref<9x16x1xf32, #tpu.memory_space<vmem>>, vector<1x16x1xf32>
    %61 = vector.shape_cast %60 : vector<1x16x1xf32> to vector<16x1xf32>
    %62 = vector.broadcast %61 : vector<16x1xf32> to vector<16x512xf32>
    %63 = arith.mulf %62, %13 : vector<16x512xf32>
    %64 = arith.addf %59, %63 : vector<16x512xf32>
    %c8 = arith.constant 8 : index
    %c0_37 = arith.constant 0 : index
    %c0_38 = arith.constant 0 : index
    %65 = vector.load %arg4[%c8, %c0_37, %c0_38] : memref<9x16x1xf32, #tpu.memory_space<vmem>>, vector<1x16x1xf32>
    %66 = vector.shape_cast %65 : vector<1x16x1xf32> to vector<16x1xf32>
    %67 = vector.broadcast %66 : vector<16x1xf32> to vector<16x512xf32>
    %68 = arith.mulf %67, %27 : vector<16x512xf32>
    %69 = arith.addf %64, %68 : vector<16x512xf32>
    %c1_i32 = arith.constant 1 : i32
    %70 = tpu.dynamic_rotate %41 by %c1_i32 dim 1 : vector<16x512xf32>, i32 -> vector<16x512xf32>
    %71 = vector.broadcast %19 : vector<1x512xf32> to vector<16x512xf32>
    %72 = arith.mulf %71, %70 : vector<16x512xf32>
    %73 = arith.addf %55, %72 : vector<16x512xf32>
    %c511_i32 = arith.constant 511 : i32
    %74 = tpu.dynamic_rotate %69 by %c511_i32 dim 1 : vector<16x512xf32>, i32 -> vector<16x512xf32>
    %75 = vector.broadcast %21 : vector<1x512xf32> to vector<16x512xf32>
    %76 = arith.mulf %75, %74 : vector<16x512xf32>
    %77 = arith.addf %73, %76 : vector<16x512xf32>
    %c0_39 = arith.constant 0 : index
    %c0_40 = arith.constant 0 : index
    %78 = vector.load %arg5[%c0_39, %c0_40] : memref<16x1xf32, #tpu.memory_space<vmem>>, vector<16x1xf32>
    %79 = vector.broadcast %78 : vector<16x1xf32> to vector<16x512xf32>
    %80 = arith.addf %77, %79 : vector<16x512xf32>
    %cst_41 = arith.constant 0.000000e+00 : f32
    %81 = vector.broadcast %cst_41 : f32 to vector<16x512xf32>
    %82 = arith.subf %81, %80 : vector<16x512xf32>
    %83 = math.exp %82 : vector<16x512xf32>
    %cst_42 = arith.constant 1.000000e+00 : f32
    %84 = vector.broadcast %cst_42 : f32 to vector<16x512xf32>
    %85 = arith.addf %84, %83 : vector<16x512xf32>
    %86 = tpu.reciprocal %85 : vector<16x512xf32> -> vector<16x512xf32>
    %87 = arith.mulf %80, %86 : vector<16x512xf32>
    %c0_43 = arith.constant 0 : index
    %c0_44 = arith.constant 0 : index
    %88 = vector.load %arg6[%c0_43, %c0_44] : memref<4x16xf32, #tpu.memory_space<vmem>>, vector<4x16xf32>
    %cst_45 = arith.constant dense<0.000000e+00> : vector<4x512xf32>
    %89 = tpu.matmul %88, %87, %cst_45 {dimension_numbers = #tpu.dot_dimension_numbers<[1], [0], [0], [1], [0, 0, 1, 1], [], []>} : vector<4x16xf32>, vector<16x512xf32>, vector<4x512xf32> -> vector<4x512xf32>
    %c0_46 = arith.constant 0 : index
    %c0_47 = arith.constant 0 : index
    %90 = vector.load %arg7[%c0_46, %c0_47] : memref<4x1xf32, #tpu.memory_space<vmem>>, vector<4x1xf32>
    %91 = vector.broadcast %90 : vector<4x1xf32> to vector<4x512xf32>
    %92 = arith.addf %89, %91 : vector<4x512xf32>
    %93 = arith.addf %92, %1 : vector<4x512xf32>
    %c0_48 = arith.constant 0 : index
    %c0_49 = arith.constant 0 : index
    %c0_50 = arith.constant 0 : index
    %94 = vector.load %arg9[%c0_48, %c0_49, %c0_50] : memref<1x4x512xf32, #tpu.memory_space<vmem>>, vector<1x4x512xf32>
    %95 = vector.shape_cast %94 : vector<1x4x512xf32> to vector<4x512xf32>
    %96 = vector.shape_cast %93 : vector<4x512xf32> to vector<1x4x512xf32>
    tpu.vector_store %arg9[%c0_48, %c0_49, %c0_50], %96 {strides = array<i32>} : memref<1x4x512xf32, #tpu.memory_space<vmem>>, vector<1x4x512xf32>,
    return
  }
  func.func @transform_0(%arg0: i32) -> (i32, i32, i32) {
    %c0_i32 = arith.constant 0 : i32
    %c0_i32_0 = arith.constant 0 : i32
    %c0_i32_1 = arith.constant 0 : i32
    return %arg0, %c0_i32, %c0_i32_0 : i32, i32, i32
  }
  func.func @transform_1(%arg0: i32) -> (i32, i32) {
    %c0_i32 = arith.constant 0 : i32
    %c0_i32_0 = arith.constant 0 : i32
    %c0_i32_1 = arith.constant 0 : i32
    return %c0_i32, %c0_i32_0 : i32, i32
  }
  func.func @transform_2(%arg0: i32) -> (i32, i32) {
    %c0_i32 = arith.constant 0 : i32
    %c0_i32_0 = arith.constant 0 : i32
    %c0_i32_1 = arith.constant 0 : i32
    return %c0_i32, %c0_i32_0 : i32, i32
  }
  func.func @transform_3(%arg0: i32) -> (i32, i32, i32) {
    %c0_i32 = arith.constant 0 : i32
    %c0_i32_0 = arith.constant 0 : i32
    %c0_i32_1 = arith.constant 0 : i32
    %c0_i32_2 = arith.constant 0 : i32
    return %c0_i32, %c0_i32_0, %c0_i32_1 : i32, i32, i32
  }
  func.func @transform_4(%arg0: i32) -> (i32, i32) {
    %c0_i32 = arith.constant 0 : i32
    %c0_i32_0 = arith.constant 0 : i32
    %c0_i32_1 = arith.constant 0 : i32
    return %c0_i32, %c0_i32_0 : i32, i32
  }
  func.func @transform_5(%arg0: i32) -> (i32, i32) {
    %c0_i32 = arith.constant 0 : i32
    %c0_i32_0 = arith.constant 0 : i32
    %c0_i32_1 = arith.constant 0 : i32
    return %c0_i32, %c0_i32_0 : i32, i32
  }
  func.func @transform_6(%arg0: i32) -> (i32, i32) {
    %c0_i32 = arith.constant 0 : i32
    %c0_i32_0 = arith.constant 0 : i32
    %c0_i32_1 = arith.constant 0 : i32
    return %c0_i32, %c0_i32_0 : i32, i32
  }
  func.func @transform_7(%arg0: i32) -> (i32, i32, i32) {
    %c0_i32 = arith.constant 0 : i32
    %c0_i32_0 = arith.constant 0 : i32
    %c0_i32_1 = arith.constant 0 : i32
    %c0_i32_2 = arith.constant 0 : i32
    return %c0_i32, %c0_i32_0, %c0_i32_1 : i32, i32, i32
  }
  func.func @transform_8(%arg0: i32) -> (i32, i32, i32) {
    %c0_i32 = arith.constant 0 : i32
    %c0_i32_0 = arith.constant 0 : i32
    %c0_i32_1 = arith.constant 0 : i32
    return %arg0, %c0_i32, %c0_i32_0 : i32, i32, i32
  }
}

</mosaic_0001>

<llo_original>
// kernel: mv2_block.1
$region0: #{mv2_block.1}
  #allocation0 [shape = 'u32[]', space=smem, size = 0x4, offset = 0x4, fixed_abs, tag = 'smem constant byte address 0x4 - core index']
  #allocation1 [shape = 'u32[144,128]{1,0:T(1,128)}', space=vmem, size = 0x12000, scoped, tag = 'internal scratch']
  %s0 = inlined_call_operand.vmem [shape: f32[1,4,512], index: 0, kind: input, shape index: {}, may-alias: {0,8}]
  %s1 = inlined_call_operand.vmem [shape: f32[16,4], index: 1, kind: input, shape index: {}]
  %s2 = inlined_call_operand.vmem [shape: f32[16,1], index: 2, kind: input, shape index: {}]
  %s3 = inlined_call_operand.vmem [shape: f32[9,16,1], index: 3, kind: input, shape index: {}]
  %s4 = inlined_call_operand.vmem [shape: f32[16,1], index: 4, kind: input, shape index: {}]
  %s5 = inlined_call_operand.vmem [shape: f32[4,16], index: 5, kind: input, shape index: {}]
  %s6 = inlined_call_operand.vmem [shape: f32[4,1], index: 6, kind: input, shape index: {}]
  %s7 = inlined_call_operand.vmem [shape: f32[4,1,512], index: 7, kind: input, shape index: {}]
  %s8 = inlined_call_operand.vmem [shape: f32[1,4,512], index: 8, kind: output, shape index: {}, may-alias: {0,8}]
  %s9 = sld [smem:[#allocation0]]
  $region42: #{mv2_block.1} parent=0
    _
  %s11 = ssub.s32 1, %s9
  %s12 = scalar_select 0, %s11, %s9
  // Predicated region
  $region2: #{mv2_block.1} parent=0 // pred_check
    _
  $region3: #{mv2_block.1} parent=0 // pred_check_branch
    %14 = sbr.rel (0) target = $region5
  $region4: #{mv2_block.1} parent=0 // pred_region
    _
  $region5: #{mv2_block.1} parent=0 // pred_fallthru
    _
  // Predicated region
  $region6: #{mv2_block.1} parent=0 // pred_check
    _
  $region7: #{mv2_block.1} parent=0 // pred_check_branch
    %16 = sbr.rel (0) target = $region9
  $region8: #{mv2_block.1} parent=0 // pred_region
    _
  $region9: #{mv2_block.1} parent=0 // pred_fallthru
    _
  // Predicated region
  $region10: #{mv2_block.1} parent=0 // pred_check
    _
  $region11: #{mv2_block.1} parent=0 // pred_check_branch
    %18 = sbr.rel (0) target = $region13
  $region12: #{mv2_block.1} parent=0 // pred_region
    _
  $region13: #{mv2_block.1} parent=0 // pred_fallthru
    _
  // Predicated region
  $region14: #{mv2_block.1} parent=0 // pred_check
    _
  $region15: #{mv2_block.1} parent=0 // pred_check_branch
    %20 = sbr.rel (0) target = $region17
  $region16: #{mv2_block.1} parent=0 // pred_region
    _
  $region17: #{mv2_block.1} parent=0 // pred_fallthru
    _
  // Predicated region
  $region18: #{mv2_block.1} parent=0 // pred_check
    _
  $region19: #{mv2_block.1} parent=0 // pred_check_branch
    %22 = sbr.rel (0) target = $region21
  $region20: #{mv2_block.1} parent=0 // pred_region
    _
  $region21: #{mv2_block.1} parent=0 // pred_fallthru
    _
  // Predicated region
  $region22: #{mv2_block.1} parent=0 // pred_check
    _
  $region23: #{mv2_block.1} parent=0 // pred_check_branch
    %24 = sbr.rel (0) target = $region25
  $region24: #{mv2_block.1} parent=0 // pred_region
    _
  $region25: #{mv2_block.1} parent=0 // pred_fallthru
    _
  // Predicated region
  $region26: #{mv2_block.1} parent=0 // pred_check
    _
  $region27: #{mv2_block.1} parent=0 // pred_check_branch
    %26 = sbr.rel (0) target = $region29
  $region28: #{mv2_block.1} parent=0 // pred_region
    _
  $region29: #{mv2_block.1} parent=0 // pred_fallthru
    _
  // Predicated region
  $region30: #{mv2_block.1} parent=0 // pred_check
    _
  $region31: #{mv2_block.1} parent=0 // pred_check_branch
    %28 = sbr.rel (0) target = $region33
  $region32: #{mv2_block.1} parent=0 // pred_region
    _
  $region33: #{mv2_block.1} parent=0 // pred_fallthru
    _
  %v29 = vld [vmem:[%s0] sm:$0xff]
  %v30 = vld [vmem:[%s0 + $0x8] sm:$0xff]
  %v31 = vld [vmem:[%s1] sm:$0xff]
  %v32 = vld [vmem:[%s1 + $0x8] sm:$0xff]
  %v33 = vld [vmem:[%s2] sm:$0xff]
  %v34 = vld [vmem:[%s2 + $0x8] sm:$0xff]
  %36 = vset.pattern.permute.xlu0 0
  %37 = vperm.xlu0 %36, %v33
  %v38 = vpop.permute.xlu0 %37
  %41 = vset.pattern.permute.xlu0 0
  %42 = vperm.xlu0 %41, %v34
  %v43 = vpop.permute.xlu0 %42
  %v47 = vcombine.high %v29, %v29
  %v48 = vcombine.high %v30, %v30
  %vm49 = vcmask 31744
  %v51 = vsel %vm49, %v31, 0
  %v54 = vsel %vm49, %v32, 0
  %vm56 = vcmask 1043456
  %v57 = vsel %vm56, %v29, 0
  %v59 = vsel %vm56, %v47, 0
  %v61 = vsel %vm56, %v30, 0
  %v63 = vsel %vm56, %v48, 0
  %65 = vmatprep.subr.mxu0 %v59
  %66 = vmatpush1.msra.mxu0 %v57
  %67 = vmatprep.subr.mxu0 0.0
  %68 = vmatpush1.msra.mxu0 0.0
  %69 = vmatprep.subr.mxu0 0.0
  %70 = vmatpush1.msra.mxu0 0.0
  %71 = vmatprep.subr.mxu0 0.0
  %72 = vmatpush1.msra.mxu0 0.0
  %73 = vmatprep.subr.mxu0 0.0
  %74 = vmatpush1.msra.mxu0 0.0
  %75 = vmatprep.subr.mxu0 0.0
  %76 = vmatpush1.msra.mxu0 0.0
  %77 = vmatprep.subr.mxu0 0.0
  %78 = vmatpush1.msra.mxu0 0.0
  %79 = vmatprep.subr.mxu0 0.0
  %80 = vmatpush1.msra.mxu0 0.0
  %81 = vmatprep.subr.mxu0 0.0
  %82 = vmatpush1.msra.mxu0 0.0
  %83 = vmatprep.subr.mxu0 0.0
  %84 = vmatpush1.msra.mxu0 0.0
  %85 = vmatprep.subr.mxu0 0.0
  %86 = vmatpush1.msra.mxu0 0.0
  %87 = vmatprep.subr.mxu0 0.0
  %88 = vmatpush1.msra.mxu0 0.0
  %89 = vmatprep.subr.mxu0 0.0
  %90 = vmatpush1.msra.mxu0 0.0
  %91 = vmatprep.subr.mxu0 0.0
  %92 = vmatpush1.msra.mxu0 0.0
  %93 = vmatprep.subr.mxu0 0.0
  %94 = vmatpush1.msra.mxu0 0.0
  %95 = vmatprep.subr.mxu0 0.0
  %96 = vmatpush1.msra.mxu0 0.0
  %97 = vmatprep.subr.mxu0 0.0
  %98 = vmatpush1.msra.mxu0 0.0
  %99 = vmatprep.subr.mxu0 0.0
  %100 = vmatpush1.msra.mxu0 0.0
  %101 = vmatprep.subr.mxu0 0.0
  %102 = vmatpush1.msra.mxu0 0.0
  %103 = vmatprep.subr.mxu0 0.0
  %104 = vmatpush1.msra.mxu0 0.0
  %105 = vmatprep.subr.mxu0 0.0
  %106 = vmatpush1.msra.mxu0 0.0
  %107 = vmatprep.subr.mxu0 0.0
  %108 = vmatpush1.msra.mxu0 0.0
  %109 = vmatprep.subr.mxu0 0.0
  %110 = vmatpush1.msra.mxu0 0.0
  %111 = vmatprep.subr.mxu0 0.0
  %112 = vmatpush1.msra.mxu0 0.0
  %113 = vmatprep.subr.mxu0 0.0
  %114 = vmatpush1.msra.mxu0 0.0
  %115 = vmatprep.subr.mxu0 0.0
  %116 = vmatpush1.msra.mxu0 0.0
  %117 = vmatprep.subr.mxu0 0.0
  %118 = vmatpush1.msra.mxu0 0.0
  %119 = vmatprep.subr.mxu0 0.0
  %120 = vmatpush1.msra.mxu0 0.0
  %121 = vmatprep.subr.mxu0 0.0
  %122 = vmatpush1.msra.mxu0 0.0
  %123 = vmatprep.subr.mxu0 0.0
  %124 = vmatpush1.msra.mxu0 0.0
  %125 = vmatprep.subr.mxu0 0.0
  %126 = vmatpush1.msra.mxu0 0.0
  %127 = vmatprep.subr.mxu0 0.0
  %128 = vmatpush1.msra.mxu0 0.0
  %129 = vmatprep.mubr.f32.mxu0 0.0
  %130 = vmatmul.mubr.f32.gmra.mrb[0].mxu0 %v51
  %v131 = vpop.f32.mrb[0].mxu0
  %v132 = vadd.f32 %v38, %v131
  %v133 = vpop.f32.mrb[0].mxu0
  %v134 = vadd.f32 %v38, %v133
  %135 = vmatprep.mubr.f32.mxu0 0.0
  %136 = vmatmul.mubr.f32.gmra.mrb[0].mxu0 %v54
  %v137 = vpop.f32.mrb[0].mxu0
  %v138 = vadd.f32 %v43, %v137
  %v139 = vpop.f32.mrb[0].mxu0
  %v140 = vadd.f32 %v43, %v139
  %141 = vdwg.mxu0
  %142 = vmatprep.subr.mxu0 %v63
  %143 = vmatpush1.msra.mxu0 %v61
  %144 = vmatprep.subr.mxu0 0.0
  %145 = vmatpush1.msra.mxu0 0.0
  %146 = vmatprep.subr.mxu0 0.0
  %147 = vmatpush1.msra.mxu0 0.0
  %148 = vmatprep.subr.mxu0 0.0
  %149 = vmatpush1.msra.mxu0 0.0
  %150 = vmatprep.subr.mxu0 0.0
  %151 = vmatpush1.msra.mxu0 0.0
  %152 = vmatprep.subr.mxu0 0.0
  %153 = vmatpush1.msra.mxu0 0.0
  %154 = vmatprep.subr.mxu0 0.0
  %155 = vmatpush1.msra.mxu0 0.0
  %156 = vmatprep.subr.mxu0 0.0
  %157 = vmatpush1.msra.mxu0 0.0
  %158 = vmatprep.subr.mxu0 0.0
  %159 = vmatpush1.msra.mxu0 0.0
  %160 = vmatprep.subr.mxu0 0.0
  %161 = vmatpush1.msra.mxu0 0.0
  %162 = vmatprep.subr.mxu0 0.0
  %163 = vmatpush1.msra.mxu0 0.0
  %164 = vmatprep.subr.mxu0 0.0
  %165 = vmatpush1.msra.mxu0 0.0
  %166 = vmatprep.subr.mxu0 0.0
  %167 = vmatpush1.msra.mxu0 0.0
  %168 = vmatprep.subr.mxu0 0.0
  %169 = vmatpush1.msra.mxu0 0.0
  %170 = vmatprep.subr.mxu0 0.0
  %171 = vmatpush1.msra.mxu0 0.0
  %172 = vmatprep.subr.mxu0 0.0
  %173 = vmatpush1.msra.mxu0 0.0
  %174 = vmatprep.subr.mxu0 0.0
  %175 = vmatpush1.msra.mxu0 0.0
  %176 = vmatprep.subr.mxu0 0.0
  %177 = vmatpush1.msra.mxu0 0.0
  %178 = vmatprep.subr.mxu0 0.0
  %179 = vmatpush1.msra.mxu0 0.0
  %180 = vmatprep.subr.mxu0 0.0
  %181 = vmatpush1.msra.mxu0 0.0
  %182 = vmatprep.subr.mxu0 0.0
  %183 = vmatpush1.msra.mxu0 0.0
  %184 = vmatprep.subr.mxu0 0.0
  %185 = vmatpush1.msra.mxu0 0.0
  %186 = vmatprep.subr.mxu0 0.0
  %187 = vmatpush1.msra.mxu0 0.0
  %188 = vmatprep.subr.mxu0 0.0
  %189 = vmatpush1.msra.mxu0 0.0
  %190 = vmatprep.subr.mxu0 0.0
  %191 = vmatpush1.msra.mxu0 0.0
  %192 = vmatprep.subr.mxu0 0.0
  %193 = vmatpush1.msra.mxu0 0.0
  %194 = vmatprep.subr.mxu0 0.0
  %195 = vmatpush1.msra.mxu0 0.0
  %196 = vmatprep.subr.mxu0 0.0
  %197 = vmatpush1.msra.mxu0 0.0
  %198 = vmatprep.subr.mxu0 0.0
  %199 = vmatpush1.msra.mxu0 0.0
  %200 = vmatprep.subr.mxu0 0.0
  %201 = vmatpush1.msra.mxu0 0.0
  %202 = vmatprep.subr.mxu0 0.0
  %203 = vmatpush1.msra.mxu0 0.0
  %204 = vmatprep.subr.mxu0 0.0
  %205 = vmatpush1.msra.mxu0 0.0
  %206 = vmatprep.mubr.f32.mxu0 0.0
  %207 = vmatmul.mubr.f32.gmra.mrb[0].mxu0 %v51
  %v208 = vpop.f32.mrb[0].mxu0
  %v209 = vadd.f32 %v38, %v208
  %v210 = vpop.f32.mrb[0].mxu0
  %v211 = vadd.f32 %v38, %v210
  %212 = vmatprep.mubr.f32.mxu0 0.0
  %213 = vmatmul.mubr.f32.gmra.mrb[0].mxu0 %v54
  %v214 = vpop.f32.mrb[0].mxu0
  %v215 = vadd.f32 %v43, %v214
  %v216 = vpop.f32.mrb[0].mxu0
  %v217 = vadd.f32 %v43, %v216
  %218 = vdwg.mxu0
  %v219 = vsub.f32 0.0, %v132
  %v220 = vsub.f32 0.0, %v134
  %v221 = vsub.f32 0.0, %v209
  %v222 = vsub.f32 0.0, %v211
  %v223 = vsub.f32 0.0, %v138
  %v224 = vsub.f32 0.0, %v140
  %v225 = vsub.f32 0.0, %v215
  %v226 = vsub.f32 0.0, %v217
  %v227 = vmul.f32 %v219, 1.442695
  %v228 = vpow.pop %v227
  %v229 = vmul.f32 %v220, 1.442695
  %v230 = vpow.pop %v229
  %v231 = vmul.f32 %v221, 1.442695
  %v232 = vpow.pop %v231
  %v233 = vmul.f32 %v222, 1.442695
  %v234 = vpow.pop %v233
  %v235 = vmul.f32 %v223, 1.442695
  %v236 = vpow.pop %v235
  %v237 = vmul.f32 %v224, 1.442695
  %v238 = vpow.pop %v237
  %v239 = vmul.f32 %v225, 1.442695
  %v240 = vpow.pop %v239
  %v241 = vmul.f32 %v226, 1.442695
  %v242 = vpow.pop %v241
  %v243 = vadd.f32 %v228, 1.0
  %v244 = vadd.f32 %v230, 1.0
  %v245 = vadd.f32 %v232, 1.0
  %v246 = vadd.f32 %v234, 1.0
  %v247 = vadd.f32 %v236, 1.0
  %v248 = vadd.f32 %v238, 1.0
  %v249 = vadd.f32 %v240, 1.0
  %v250 = vadd.f32 %v242, 1.0
  %v251 = vrcp.pop %v243
  %v252 = vrcp.pop %v244
  %v253 = vrcp.pop %v245
  %v254 = vrcp.pop %v246
  %v255 = vrcp.pop %v247
  %v256 = vrcp.pop %v248
  %v257 = vrcp.pop %v249
  %v258 = vrcp.pop %v250
  %v259 = vmul.f32 %v132, %v251
  %v260 = vmul.f32 %v134, %v252
  %v261 = vmul.f32 %v209, %v253
  %v262 = vmul.f32 %v211, %v254
  %v263 = vmul.f32 %v138, %v255
  %v264 = vmul.f32 %v140, %v256
  %v265 = vmul.f32 %v215, %v257
  %v266 = vmul.f32 %v217, %v258
  %v267 = vld [vmem:[%s7] sm:$0xf]
  %s268 = scalar_lea.vmem %s7, 4
  %v269 = vld [vmem:[%s268] sm:$0xf]
  %s270 = scalar_lea.vmem %s7, 8
  %v271 = vld [vmem:[%s270] sm:$0xf]
  %s272 = scalar_lea.vmem %s7, 12
  %v273 = vld [vmem:[%s272] sm:$0xf]
  %274 = vrot.lane.b32.xlu0 %v259, 16
  %v275 = vpop.permute.xlu0 %274
  %276 = vrot.lane.b32.xlu0 %v263, 16
  %v277 = vpop.permute.xlu0 %276
  %278 = vrot.lane.b32.xlu0 %v260, 16
  %v279 = vpop.permute.xlu0 %278
  %280 = vrot.lane.b32.xlu0 %v264, 16
  %v281 = vpop.permute.xlu0 %280
  %282 = vrot.lane.b32.xlu0 %v261, 16
  %v283 = vpop.permute.xlu0 %282
  %284 = vrot.lane.b32.xlu0 %v265, 16
  %v285 = vpop.permute.xlu0 %284
  %286 = vrot.lane.b32.xlu0 %v262, 16
  %v287 = vpop.permute.xlu0 %286
  %288 = vrot.lane.b32.xlu0 %v266, 16
  %v289 = vpop.permute.xlu0 %288
  %v290 = vlaneseq
  %v291 = vand.u32 %v290, 127
  %vm292 = vcmp.lt.s32.totalorder %v291, 16
  %v293 = vsel %vm292, %v283, %v287
  %v294 = vsel %vm292, %v285, %v289
  %v295 = vsel %vm292, %v279, %v283
  %v296 = vsel %vm292, %v281, %v285
  %v297 = vsel %vm292, %v275, %v279
  %v298 = vsel %vm292, %v277, %v281
  %v299 = vsel %vm292, %v287, %v275
  %v300 = vsel %vm292, %v289, %v277
  %v302 = vlaneseq
  %v303 = vshrl.u32 %v302, 7
  %v304 = vsub.s32 0, %v303
  %v305 = vrot.slane %v267, %v304
  %v306 = vlaneseq
  %v307 = vshrl.u32 %v306, 7
  %v308 = vsub.s32 1, %v307
  %v309 = vrot.slane %v267, %v308
  %v310 = vlaneseq
  %v311 = vshrl.u32 %v310, 7
  %v312 = vsub.s32 2, %v311
  %v313 = vrot.slane %v267, %v312
  %v314 = vlaneseq
  %v315 = vshrl.u32 %v314, 7
  %v316 = vsub.s32 3, %v315
  %v317 = vrot.slane %v267, %v316
  %v322 = vmul.f32 %v305, %v299
  %v323 = vmul.f32 %v309, %v297
  %v324 = vmul.f32 %v313, %v295
  %v325 = vmul.f32 %v317, %v293
  %v326 = vmul.f32 %v305, %v300
  %v327 = vmul.f32 %v309, %v298
  %v328 = vmul.f32 %v313, %v296
  %v329 = vmul.f32 %v317, %v294
  %330 = vrot.lane.b32.xlu0 %v259, 112
  %v331 = vpop.permute.xlu0 %330
  %332 = vrot.lane.b32.xlu0 %v263, 112
  %v333 = vpop.permute.xlu0 %332
  %334 = vrot.lane.b32.xlu0 %v260, 112
  %v335 = vpop.permute.xlu0 %334
  %336 = vrot.lane.b32.xlu0 %v264, 112
  %v337 = vpop.permute.xlu0 %336
  %338 = vrot.lane.b32.xlu0 %v261, 112
  %v339 = vpop.permute.xlu0 %338
  %340 = vrot.lane.b32.xlu0 %v265, 112
  %v341 = vpop.permute.xlu0 %340
  %342 = vrot.lane.b32.xlu0 %v262, 112
  %v343 = vpop.permute.xlu0 %342
  %344 = vrot.lane.b32.xlu0 %v266, 112
  %v345 = vpop.permute.xlu0 %344
  %vm346 = vcmp.lt.s32.totalorder %v291, 112
  %v347 = vsel %vm346, %v339, %v343
  %v348 = vsel %vm346, %v341, %v345
  %v349 = vsel %vm346, %v335, %v339
  %v350 = vsel %vm346, %v337, %v341
  %v351 = vsel %vm346, %v331, %v335
  %v352 = vsel %vm346, %v333, %v337
  %v353 = vsel %vm346, %v343, %v331
  %v354 = vsel %vm346, %v345, %v333
  %v356 = vlaneseq
  %v357 = vshrl.u32 %v356, 7
  %v358 = vsub.s32 0, %v357
  %v359 = vrot.slane %v269, %v358
  %v360 = vlaneseq
  %v361 = vshrl.u32 %v360, 7
  %v362 = vsub.s32 1, %v361
  %v363 = vrot.slane %v269, %v362
  %v364 = vlaneseq
  %v365 = vshrl.u32 %v364, 7
  %v366 = vsub.s32 2, %v365
  %v367 = vrot.slane %v269, %v366
  %v368 = vlaneseq
  %v369 = vshrl.u32 %v368, 7
  %v370 = vsub.s32 3, %v369
  %v371 = vrot.slane %v269, %v370
  %v376 = vmul.f32 %v359, %v351
  %v377 = vmul.f32 %v363, %v349
  %v378 = vmul.f32 %v367, %v347
  %v379 = vmul.f32 %v371, %v353
  %v380 = vmul.f32 %v359, %v352
  %v381 = vmul.f32 %v363, %v350
  %v382 = vmul.f32 %v367, %v348
  %v383 = vmul.f32 %v371, %v354
  %v384 = vld [vmem:[%s3] sm:$0xff]
  %v385 = vld [vmem:[%s3 + $0x8] sm:$0xff]
  %387 = vset.pattern.permute.xlu0 0
  %388 = vperm.xlu0 %387, %v384
  %v389 = vpop.permute.xlu0 %388
  %392 = vset.pattern.permute.xlu0 0
  %393 = vperm.xlu0 %392, %v385
  %v394 = vpop.permute.xlu0 %393
  %v396 = vmul.f32 %v389, %v322
  %v397 = vmul.f32 %v389, %v323
  %v398 = vmul.f32 %v389, %v324
  %v399 = vmul.f32 %v389, %v325
  %v400 = vmul.f32 %v394, %v326
  %v401 = vmul.f32 %v394, %v327
  %v402 = vmul.f32 %v394, %v328
  %v403 = vmul.f32 %v394, %v329
  %s404 = scalar_lea.vmem %s3, 48
  %v405 = vld [vmem:[%s404] sm:$0xff]
  %v406 = vld [vmem:[%s404 + $0x8] sm:$0xff]
  %408 = vset.pattern.permute.xlu0 0
  %409 = vperm.xlu0 %408, %v405
  %v410 = vpop.permute.xlu0 %409
  %413 = vset.pattern.permute.xlu0 0
  %414 = vperm.xlu0 %413, %v406
  %v415 = vpop.permute.xlu0 %414
  %v417 = vmul.f32 %v410, %v259
  %v418 = vmul.f32 %v410, %v260
  %v419 = vmul.f32 %v410, %v261
  %v420 = vmul.f32 %v410, %v262
  %v421 = vmul.f32 %v415, %v263
  %v422 = vmul.f32 %v415, %v264
  %v423 = vmul.f32 %v415, %v265
  %v424 = vmul.f32 %v415, %v266
  %v425 = vadd.f32 %v396, %v417
  %v426 = vadd.f32 %v397, %v418
  %v427 = vadd.f32 %v398, %v419
  %v428 = vadd.f32 %v399, %v420
  %v429 = vadd.f32 %v400, %v421
  %v430 = vadd.f32 %v401, %v422
  %v431 = vadd.f32 %v402, %v423
  %v432 = vadd.f32 %v403, %v424
  %s433 = scalar_lea.vmem %s3, 96
  %v434 = vld [vmem:[%s433] sm:$0xff]
  %v435 = vld [vmem:[%s433 + $0x8] sm:$0xff]
  %437 = vset.pattern.permute.xlu0 0
  %438 = vperm.xlu0 %437, %v434
  %v439 = vpop.permute.xlu0 %438
  %442 = vset.pattern.permute.xlu0 0
  %443 = vperm.xlu0 %442, %v435
  %v444 = vpop.permute.xlu0 %443
  %v446 = vmul.f32 %v439, %v376
  %v447 = vmul.f32 %v439, %v377
  %v448 = vmul.f32 %v439, %v378
  %v449 = vmul.f32 %v439, %v379
  %v450 = vmul.f32 %v444, %v380
  %v451 = vmul.f32 %v444, %v381
  %v452 = vmul.f32 %v444, %v382
  %v453 = vmul.f32 %v444, %v383
  %v454 = vadd.f32 %v425, %v446
  %v455 = vadd.f32 %v426, %v447
  %v456 = vadd.f32 %v427, %v448
  %v457 = vadd.f32 %v428, %v449
  %v458 = vadd.f32 %v429, %v450
  %v459 = vadd.f32 %v430, %v451
  %v460 = vadd.f32 %v431, %v452
  %v461 = vadd.f32 %v432, %v453
  %s462 = scalar_lea.vmem %s3, 16
  %v463 = vld [vmem:[%s462] sm:$0xff]
  %v464 = vld [vmem:[%s462 + $0x8] sm:$0xff]
  %466 = vset.pattern.permute.xlu0 0
  %467 = vperm.xlu0 %466, %v463
  %v468 = vpop.permute.xlu0 %467
  %471 = vset.pattern.permute.xlu0 0
  %472 = vperm.xlu0 %471, %v464
  %v473 = vpop.permute.xlu0 %472
  %v475 = vmul.f32 %v468, %v322
  %v476 = vmul.f32 %v468, %v323
  %v477 = vmul.f32 %v468, %v324
  %v478 = vmul.f32 %v468, %v325
  %v479 = vmul.f32 %v473, %v326
  %v480 = vmul.f32 %v473, %v327
  %v481 = vmul.f32 %v473, %v328
  %v482 = vmul.f32 %v473, %v329
  %s483 = scalar_lea.vmem %s3, 64
  %v484 = vld [vmem:[%s483] sm:$0xff]
  %v485 = vld [vmem:[%s483 + $0x8] sm:$0xff]
  %487 = vset.pattern.permute.xlu0 0
  %488 = vperm.xlu0 %487, %v484
  %v489 = vpop.permute.xlu0 %488
  %492 = vset.pattern.permute.xlu0 0
  %493 = vperm.xlu0 %492, %v485
  %v494 = vpop.permute.xlu0 %493
  %v496 = vmul.f32 %v489, %v259
  %v497 = vmul.f32 %v489, %v260
  %v498 = vmul.f32 %v489, %v261
  %v499 = vmul.f32 %v489, %v262
  %v500 = vmul.f32 %v494, %v263
  %v501 = vmul.f32 %v494, %v264
  %v502 = vmul.f32 %v494, %v265
  %v503 = vmul.f32 %v494, %v266
  %v504 = vadd.f32 %v475, %v496
  %v505 = vadd.f32 %v476, %v497
  %v506 = vadd.f32 %v477, %v498
  %v507 = vadd.f32 %v478, %v499
  %v508 = vadd.f32 %v479, %v500
  %v509 = vadd.f32 %v480, %v501
  %v510 = vadd.f32 %v481, %v502
  %v511 = vadd.f32 %v482, %v503
  %s512 = scalar_lea.vmem %s3, 112
  %v513 = vld [vmem:[%s512] sm:$0xff]
  %v514 = vld [vmem:[%s512 + $0x8] sm:$0xff]
  %516 = vset.pattern.permute.xlu0 0
  %517 = vperm.xlu0 %516, %v513
  %v518 = vpop.permute.xlu0 %517
  %521 = vset.pattern.permute.xlu0 0
  %522 = vperm.xlu0 %521, %v514
  %v523 = vpop.permute.xlu0 %522
  %v525 = vmul.f32 %v518, %v376
  %v526 = vmul.f32 %v518, %v377
  %v527 = vmul.f32 %v518, %v378
  %v528 = vmul.f32 %v518, %v379
  %v529 = vmul.f32 %v523, %v380
  %v530 = vmul.f32 %v523, %v381
  %v531 = vmul.f32 %v523, %v382
  %v532 = vmul.f32 %v523, %v383
  %v533 = vadd.f32 %v504, %v525
  %v534 = vadd.f32 %v505, %v526
  %v535 = vadd.f32 %v506, %v527
  %v536 = vadd.f32 %v507, %v528
  %v537 = vadd.f32 %v508, %v529
  %v538 = vadd.f32 %v509, %v530
  %v539 = vadd.f32 %v510, %v531
  %v540 = vadd.f32 %v511, %v532
  %s541 = scalar_lea.vmem %s3, 32
  %v542 = vld [vmem:[%s541] sm:$0xff]
  %v543 = vld [vmem:[%s541 + $0x8] sm:$0xff]
  %545 = vset.pattern.permute.xlu0 0
  %546 = vperm.xlu0 %545, %v542
  %v547 = vpop.permute.xlu0 %546
  %550 = vset.pattern.permute.xlu0 0
  %551 = vperm.xlu0 %550, %v543
  %v552 = vpop.permute.xlu0 %551
  %v554 = vmul.f32 %v547, %v322
  %v555 = vmul.f32 %v547, %v323
  %v556 = vmul.f32 %v547, %v324
  %v557 = vmul.f32 %v547, %v325
  %v558 = vmul.f32 %v552, %v326
  %v559 = vmul.f32 %v552, %v327
  %v560 = vmul.f32 %v552, %v328
  %v561 = vmul.f32 %v552, %v329
  %s562 = scalar_lea.vmem %s3, 80
  %v563 = vld [vmem:[%s562] sm:$0xff]
  %v564 = vld [vmem:[%s562 + $0x8] sm:$0xff]
  %566 = vset.pattern.permute.xlu0 0
  %567 = vperm.xlu0 %566, %v563
  %v568 = vpop.permute.xlu0 %567
  %571 = vset.pattern.permute.xlu0 0
  %572 = vperm.xlu0 %571, %v564
  %v573 = vpop.permute.xlu0 %572
  %v575 = vmul.f32 %v568, %v259
  %v576 = vmul.f32 %v568, %v260
  %v577 = vmul.f32 %v568, %v261
  %v578 = vmul.f32 %v568, %v262
  %v579 = vmul.f32 %v573, %v263
  %v580 = vmul.f32 %v573, %v264
  %v581 = vmul.f32 %v573, %v265
  %v582 = vmul.f32 %v573, %v266
  %v583 = vadd.f32 %v554, %v575
  %v584 = vadd.f32 %v555, %v576
  %v585 = vadd.f32 %v556, %v577
  %v586 = vadd.f32 %v557, %v578
  %v587 = vadd.f32 %v558, %v579
  %v588 = vadd.f32 %v559, %v580
  %v589 = vadd.f32 %v560, %v581
  %v590 = vadd.f32 %v561, %v582
  %s591 = scalar_lea.vmem %s3, 128
  %v592 = vld [vmem:[%s591] sm:$0xff]
  %v593 = vld [vmem:[%s591 + $0x8] sm:$0xff]
  %595 = vset.pattern.permute.xlu0 0
  %596 = vperm.xlu0 %595, %v592
  %v597 = vpop.permute.xlu0 %596
  %600 = vset.pattern.permute.xlu0 0
  %601 = vperm.xlu0 %600, %v593
  %v602 = vpop.permute.xlu0 %601
  %v604 = vmul.f32 %v597, %v376
  %v605 = vmul.f32 %v597, %v377
  %v606 = vmul.f32 %v597, %v378
  %v607 = vmul.f32 %v597, %v379
  %v608 = vmul.f32 %v602, %v380
  %v609 = vmul.f32 %v602, %v381
  %v610 = vmul.f32 %v602, %v382
  %v611 = vmul.f32 %v602, %v383
  %v612 = vadd.f32 %v583, %v604
  %v613 = vadd.f32 %v584, %v605
  %v614 = vadd.f32 %v585, %v606
  %v615 = vadd.f32 %v586, %v607
  %v616 = vadd.f32 %v587, %v608
  %v617 = vadd.f32 %v588, %v609
  %v618 = vadd.f32 %v589, %v610
  %v619 = vadd.f32 %v590, %v611
  %620 = vrot.lane.b32.xlu0 %v454, 1
  %v621 = vpop.permute.xlu0 %620
  %622 = vrot.lane.b32.xlu0 %v458, 1
  %v623 = vpop.permute.xlu0 %622
  %624 = vrot.lane.b32.xlu0 %v455, 1
  %v625 = vpop.permute.xlu0 %624
  %626 = vrot.lane.b32.xlu0 %v459, 1
  %v627 = vpop.permute.xlu0 %626
  %628 = vrot.lane.b32.xlu0 %v456, 1
  %v629 = vpop.permute.xlu0 %628
  %630 = vrot.lane.b32.xlu0 %v460, 1
  %v631 = vpop.permute.xlu0 %630
  %632 = vrot.lane.b32.xlu0 %v457, 1
  %v633 = vpop.permute.xlu0 %632
  %634 = vrot.lane.b32.xlu0 %v461, 1
  %v635 = vpop.permute.xlu0 %634
  %vm636 = vcmp.lt.s32.totalorder %v291, 1
  %v637 = vsel %vm636, %v629, %v633
  %v638 = vsel %vm636, %v631, %v635
  %v639 = vsel %vm636, %v625, %v629
  %v640 = vsel %vm636, %v627, %v631
  %v641 = vsel %vm636, %v621, %v625
  %v642 = vsel %vm636, %v623, %v627
  %v643 = vsel %vm636, %v633, %v621
  %v644 = vsel %vm636, %v635, %v623
  %v646 = vlaneseq
  %v647 = vshrl.u32 %v646, 7
  %v648 = vsub.s32 0, %v647
  %v649 = vrot.slane %v271, %v648
  %v650 = vlaneseq
  %v651 = vshrl.u32 %v650, 7
  %v652 = vsub.s32 1, %v651
  %v653 = vrot.slane %v271, %v652
  %v654 = vlaneseq
  %v655 = vshrl.u32 %v654, 7
  %v656 = vsub.s32 2, %v655
  %v657 = vrot.slane %v271, %v656
  %v658 = vlaneseq
  %v659 = vshrl.u32 %v658, 7
  %v660 = vsub.s32 3, %v659
  %v661 = vrot.slane %v271, %v660
  %v666 = vmul.f32 %v649, %v643
  %v667 = vmul.f32 %v653, %v641
  %v668 = vmul.f32 %v657, %v639
  %v669 = vmul.f32 %v661, %v637
  %v670 = vmul.f32 %v649, %v644
  %v671 = vmul.f32 %v653, %v642
  %v672 = vmul.f32 %v657, %v640
  %v673 = vmul.f32 %v661, %v638
  %v674 = vadd.f32 %v533, %v666
  %v675 = vadd.f32 %v534, %v667
  %v676 = vadd.f32 %v535, %v668
  %v677 = vadd.f32 %v536, %v669
  %v678 = vadd.f32 %v537, %v670
  %v679 = vadd.f32 %v538, %v671
  %v680 = vadd.f32 %v539, %v672
  %v681 = vadd.f32 %v540, %v673
  %682 = vrot.lane.b32.xlu0 %v612, 127
  %v683 = vpop.permute.xlu0 %682
  %684 = vrot.lane.b32.xlu0 %v616, 127
  %v685 = vpop.permute.xlu0 %684
  %686 = vrot.lane.b32.xlu0 %v613, 127
  %v687 = vpop.permute.xlu0 %686
  %688 = vrot.lane.b32.xlu0 %v617, 127
  %v689 = vpop.permute.xlu0 %688
  %690 = vrot.lane.b32.xlu0 %v614, 127
  %v691 = vpop.permute.xlu0 %690
  %692 = vrot.lane.b32.xlu0 %v618, 127
  %v693 = vpop.permute.xlu0 %692
  %694 = vrot.lane.b32.xlu0 %v615, 127
  %v695 = vpop.permute.xlu0 %694
  %696 = vrot.lane.b32.xlu0 %v619, 127
  %v697 = vpop.permute.xlu0 %696
  %vm698 = vcmp.lt.s32.totalorder %v291, 127
  %v699 = vsel %vm698, %v691, %v695
  %v700 = vsel %vm698, %v693, %v697
  %v701 = vsel %vm698, %v687, %v691
  %v702 = vsel %vm698, %v689, %v693
  %v703 = vsel %vm698, %v683, %v687
  %v704 = vsel %vm698, %v685, %v689
  %v705 = vsel %vm698, %v695, %v683
  %v706 = vsel %vm698, %v697, %v685
  %v708 = vlaneseq
  %v709 = vshrl.u32 %v708, 7
  %v710 = vsub.s32 0, %v709
  %v711 = vrot.slane %v273, %v710
  %v712 = vlaneseq
  %v713 = vshrl.u32 %v712, 7
  %v714 = vsub.s32 1, %v713
  %v715 = vrot.slane %v273, %v714
  %v716 = vlaneseq
  %v717 = vshrl.u32 %v716, 7
  %v718 = vsub.s32 2, %v717
  %v719 = vrot.slane %v273, %v718
  %v720 = vlaneseq
  %v721 = vshrl.u32 %v720, 7
  %v722 = vsub.s32 3, %v721
  %v723 = vrot.slane %v273, %v722
  %v728 = vmul.f32 %v711, %v703
  %v729 = vmul.f32 %v715, %v701
  %v730 = vmul.f32 %v719, %v699
  %v731 = vmul.f32 %v723, %v705
  %v732 = vmul.f32 %v711, %v704
  %v733 = vmul.f32 %v715, %v702
  %v734 = vmul.f32 %v719, %v700
  %v735 = vmul.f32 %v723, %v706
  %v736 = vadd.f32 %v674, %v728
  %v737 = vadd.f32 %v675, %v729
  %v738 = vadd.f32 %v676, %v730
  %v739 = vadd.f32 %v677, %v731
  %v740 = vadd.f32 %v678, %v732
  %v741 = vadd.f32 %v679, %v733
  %v742 = vadd.f32 %v680, %v734
  %v743 = vadd.f32 %v681, %v735
  %v744 = vld [vmem:[%s4] sm:$0xff]
  %v745 = vld [vmem:[%s4 + $0x8] sm:$0xff]
  %747 = vset.pattern.permute.xlu0 0
  %748 = vperm.xlu0 %747, %v744
  %v749 = vpop.permute.xlu0 %748
  %752 = vset.pattern.permute.xlu0 0
  %753 = vperm.xlu0 %752, %v745
  %v754 = vpop.permute.xlu0 %753
  %v756 = vadd.f32 %v736, %v749
  %v757 = vadd.f32 %v737, %v749
  %v758 = vadd.f32 %v738, %v749
  %v759 = vadd.f32 %v739, %v749
  %v760 = vadd.f32 %v740, %v754
  %v761 = vadd.f32 %v741, %v754
  %v762 = vadd.f32 %v742, %v754
  %v763 = vadd.f32 %v743, %v754
  %v764 = vsub.f32 0.0, %v756
  %v765 = vsub.f32 0.0, %v757
  %v766 = vsub.f32 0.0, %v758
  %v767 = vsub.f32 0.0, %v759
  %v768 = vsub.f32 0.0, %v760
  %v769 = vsub.f32 0.0, %v761
  %v770 = vsub.f32 0.0, %v762
  %v771 = vsub.f32 0.0, %v763
  %v772 = vmul.f32 %v764, 1.442695
  %v773 = vpow.pop %v772
  %v774 = vmul.f32 %v765, 1.442695
  %v775 = vpow.pop %v774
  %v776 = vmul.f32 %v766, 1.442695
  %v777 = vpow.pop %v776
  %v778 = vmul.f32 %v767, 1.442695
  %v779 = vpow.pop %v778
  %v780 = vmul.f32 %v768, 1.442695
  %v781 = vpow.pop %v780
  %v782 = vmul.f32 %v769, 1.442695
  %v783 = vpow.pop %v782
  %v784 = vmul.f32 %v770, 1.442695
  %v785 = vpow.pop %v784
  %v786 = vmul.f32 %v771, 1.442695
  %v787 = vpow.pop %v786
  %v788 = vadd.f32 %v773, 1.0
  %v789 = vadd.f32 %v775, 1.0
  %v790 = vadd.f32 %v777, 1.0
  %v791 = vadd.f32 %v779, 1.0
  %v792 = vadd.f32 %v781, 1.0
  %v793 = vadd.f32 %v783, 1.0
  %v794 = vadd.f32 %v785, 1.0
  %v795 = vadd.f32 %v787, 1.0
  %v796 = vrcp.pop %v788
  %v797 = vrcp.pop %v789
  %v798 = vrcp.pop %v790
  %v799 = vrcp.pop %v791
  %v800 = vrcp.pop %v792
  %v801 = vrcp.pop %v793
  %v802 = vrcp.pop %v794
  %v803 = vrcp.pop %v795
  %v804 = vmul.f32 %v756, %v796
  %v805 = vmul.f32 %v757, %v797
  %v806 = vmul.f32 %v758, %v798
  %v807 = vmul.f32 %v759, %v799
  %v808 = vmul.f32 %v760, %v800
  %v809 = vmul.f32 %v761, %v801
  %v810 = vmul.f32 %v762, %v802
  %v811 = vmul.f32 %v763, %v803
  %v812 = vld [vmem:[%s5] sm:$0xf]
  %v813 = vld [vmem:[%s6] sm:$0xf]
  %815 = vset.pattern.permute.xlu0 0
  %816 = vperm.xlu0 %815, %v813
  %v817 = vpop.permute.xlu0 %816
  %vm819 = vcmask 130048
  %v821 = vsel %vm819, %v812, 0
  %823 = vmatprep.subr.mxu0 %v805
  %824 = vmatpush1.msra.mxu0 %v804
  %825 = vmatprep.subr.mxu0 %v809
  %826 = vmatpush1.msra.mxu0 %v808
  %827 = vmatprep.subr.mxu0 0.0
  %828 = vmatpush1.msra.mxu0 0.0
  %829 = vmatprep.subr.mxu0 0.0
  %830 = vmatpush1.msra.mxu0 0.0
  %831 = vmatprep.subr.mxu0 0.0
  %832 = vmatpush1.msra.mxu0 0.0
  %833 = vmatprep.subr.mxu0 0.0
  %834 = vmatpush1.msra.mxu0 0.0
  %835 = vmatprep.subr.mxu0 0.0
  %836 = vmatpush1.msra.mxu0 0.0
  %837 = vmatprep.subr.mxu0 0.0
  %838 = vmatpush1.msra.mxu0 0.0
  %839 = vmatprep.subr.mxu0 0.0
  %840 = vmatpush1.msra.mxu0 0.0
  %841 = vmatprep.subr.mxu0 0.0
  %842 = vmatpush1.msra.mxu0 0.0
  %843 = vmatprep.subr.mxu0 0.0
  %844 = vmatpush1.msra.mxu0 0.0
  %845 = vmatprep.subr.mxu0 0.0
  %846 = vmatpush1.msra.mxu0 0.0
  %847 = vmatprep.subr.mxu0 0.0
  %848 = vmatpush1.msra.mxu0 0.0
  %849 = vmatprep.subr.mxu0 0.0
  %850 = vmatpush1.msra.mxu0 0.0
  %851 = vmatprep.subr.mxu0 0.0
  %852 = vmatpush1.msra.mxu0 0.0
  %853 = vmatprep.subr.mxu0 0.0
  %854 = vmatpush1.msra.mxu0 0.0
  %855 = vmatprep.subr.mxu0 0.0
  %856 = vmatpush1.msra.mxu0 0.0
  %857 = vmatprep.subr.mxu0 0.0
  %858 = vmatpush1.msra.mxu0 0.0
  %859 = vmatprep.subr.mxu0 0.0
  %860 = vmatpush1.msra.mxu0 0.0
  %861 = vmatprep.subr.mxu0 0.0
  %862 = vmatpush1.msra.mxu0 0.0
  %863 = vmatprep.subr.mxu0 0.0
  %864 = vmatpush1.msra.mxu0 0.0
  %865 = vmatprep.subr.mxu0 0.0
  %866 = vmatpush1.msra.mxu0 0.0
  %867 = vmatprep.subr.mxu0 0.0
  %868 = vmatpush1.msra.mxu0 0.0
  %869 = vmatprep.subr.mxu0 0.0
  %870 = vmatpush1.msra.mxu0 0.0
  %871 = vmatprep.subr.mxu0 0.0
  %872 = vmatpush1.msra.mxu0 0.0
  %873 = vmatprep.subr.mxu0 0.0
  %874 = vmatpush1.msra.mxu0 0.0
  %875 = vmatprep.subr.mxu0 0.0
  %876 = vmatpush1.msra.mxu0 0.0
  %877 = vmatprep.subr.mxu0 0.0
  %878 = vmatpush1.msra.mxu0 0.0
  %879 = vmatprep.subr.mxu0 0.0
  %880 = vmatpush1.msra.mxu0 0.0
  %881 = vmatprep.subr.mxu0 0.0
  %882 = vmatpush1.msra.mxu0 0.0
  %883 = vmatprep.subr.mxu0 0.0
  %884 = vmatpush1.msra.mxu0 0.0
  %885 = vmatprep.subr.mxu0 0.0
  %886 = vmatpush1.msra.mxu0 0.0
  %887 = vmatprep.mubr.f32.mxu0 0.0
  %888 = vmatmul.mubr.f32.gmra.mrb[0].mxu0 %v821
  %v889 = vpop.f32.mrb[0].mxu0
  %v890 = vadd.f32 %v817, %v889
  %v891 = vpop.f32.mrb[0].mxu0
  %v892 = vadd.f32 %v817, %v891
  %893 = vdwg.mxu0
  %894 = vmatprep.subr.mxu0 %v807
  %895 = vmatpush1.msra.mxu0 %v806
  %896 = vmatprep.subr.mxu0 %v811
  %897 = vmatpush1.msra.mxu0 %v810
  %898 = vmatprep.subr.mxu0 0.0
  %899 = vmatpush1.msra.mxu0 0.0
  %900 = vmatprep.subr.mxu0 0.0
  %901 = vmatpush1.msra.mxu0 0.0
  %902 = vmatprep.subr.mxu0 0.0
  %903 = vmatpush1.msra.mxu0 0.0
  %904 = vmatprep.subr.mxu0 0.0
  %905 = vmatpush1.msra.mxu0 0.0
  %906 = vmatprep.subr.mxu0 0.0
  %907 = vmatpush1.msra.mxu0 0.0
  %908 = vmatprep.subr.mxu0 0.0
  %909 = vmatpush1.msra.mxu0 0.0
  %910 = vmatprep.subr.mxu0 0.0
  %911 = vmatpush1.msra.mxu0 0.0
  %912 = vmatprep.subr.mxu0 0.0
  %913 = vmatpush1.msra.mxu0 0.0
  %914 = vmatprep.subr.mxu0 0.0
  %915 = vmatpush1.msra.mxu0 0.0
  %916 = vmatprep.subr.mxu0 0.0
  %917 = vmatpush1.msra.mxu0 0.0
  %918 = vmatprep.subr.mxu0 0.0
  %919 = vmatpush1.msra.mxu0 0.0
  %920 = vmatprep.subr.mxu0 0.0
  %921 = vmatpush1.msra.mxu0 0.0
  %922 = vmatprep.subr.mxu0 0.0
  %923 = vmatpush1.msra.mxu0 0.0
  %924 = vmatprep.subr.mxu0 0.0
  %925 = vmatpush1.msra.mxu0 0.0
  %926 = vmatprep.subr.mxu0 0.0
  %927 = vmatpush1.msra.mxu0 0.0
  %928 = vmatprep.subr.mxu0 0.0
  %929 = vmatpush1.msra.mxu0 0.0
  %930 = vmatprep.subr.mxu0 0.0
  %931 = vmatpush1.msra.mxu0 0.0
  %932 = vmatprep.subr.mxu0 0.0
  %933 = vmatpush1.msra.mxu0 0.0
  %934 = vmatprep.subr.mxu0 0.0
  %935 = vmatpush1.msra.mxu0 0.0
  %936 = vmatprep.subr.mxu0 0.0
  %937 = vmatpush1.msra.mxu0 0.0
  %938 = vmatprep.subr.mxu0 0.0
  %939 = vmatpush1.msra.mxu0 0.0
  %940 = vmatprep.subr.mxu0 0.0
  %941 = vmatpush1.msra.mxu0 0.0
  %942 = vmatprep.subr.mxu0 0.0
  %943 = vmatpush1.msra.mxu0 0.0
  %944 = vmatprep.subr.mxu0 0.0
  %945 = vmatpush1.msra.mxu0 0.0
  %946 = vmatprep.subr.mxu0 0.0
  %947 = vmatpush1.msra.mxu0 0.0
  %948 = vmatprep.subr.mxu0 0.0
  %949 = vmatpush1.msra.mxu0 0.0
  %950 = vmatprep.subr.mxu0 0.0
  %951 = vmatpush1.msra.mxu0 0.0
  %952 = vmatprep.subr.mxu0 0.0
  %953 = vmatpush1.msra.mxu0 0.0
  %954 = vmatprep.subr.mxu0 0.0
  %955 = vmatpush1.msra.mxu0 0.0
  %956 = vmatprep.subr.mxu0 0.0
  %957 = vmatpush1.msra.mxu0 0.0
  %958 = vmatprep.mubr.f32.mxu0 0.0
  %959 = vmatmul.mubr.f32.gmra.mrb[0].mxu0 %v821
  %v960 = vpop.f32.mrb[0].mxu0
  %v961 = vadd.f32 %v817, %v960
  %v962 = vpop.f32.mrb[0].mxu0
  %v963 = vadd.f32 %v817, %v962
  %964 = vdwg.mxu0
  %v967 = vadd.f32 %v890, %v29
  %v968 = vadd.f32 %v892, %v47
  %v969 = vadd.f32 %v961, %v30
  %v970 = vadd.f32 %v963, %v48
  %v975 = vcombine.low %v967, %v968
  %v976 = vcombine.low %v969, %v970
  %979 = vst [vmem:[%s8] sm:$0xff] %v975
  %980 = vst [vmem:[%s8 + $0x8] sm:$0xff] %v976
  // Predicated region
  $region34: #{mv2_block.1} parent=0 // pred_check
    _
  $region35: #{mv2_block.1} parent=0 // pred_check_branch
    %982 = sbr.rel (0) target = $region37
  $region36: #{mv2_block.1} parent=0 // pred_region
    _
  $region37: #{mv2_block.1} parent=0 // pred_fallthru
    _
  // Predicated region
  $region38: #{mv2_block.1} parent=0 // pred_check
    _
  $region39: #{mv2_block.1} parent=0 // pred_check_branch
    %984 = sbr.rel (0) target = $region41
  $region40: #{mv2_block.1} parent=0 // pred_region
    _
  $region41: #{mv2_block.1} parent=0 // pred_fallthru
    _

</llo_original>
